<compile_context>
chip_gen: v5e
topology: v5e:2x2
jax: 0.10.0
libtpu: 0.0.40
codegen_flags: <defaults>
</compile_context>

<pallas_src>
import jax
import jax.numpy as jnp
from jax.experimental import pallas as pl
from jax.experimental.pallas import tpu as pltpu


def _round_up(x, m):
    return ((x + m - 1) // m) * m


# ---------------------------------------------------------------------------
# Primary kernel: weight + bias resident in VMEM, 1-D grid over M tiles.
# ---------------------------------------------------------------------------
def _linear_resident_kernel(x_ref, w_ref, b_ref, o_ref):
    acc = jnp.dot(x_ref[...], w_ref[...], preferred_element_type=jnp.float32)
    o_ref[...] = (acc + b_ref[...].astype(jnp.float32)).astype(o_ref.dtype)


# ---------------------------------------------------------------------------
# Fallback kernel (only for weights too large to keep resident): classic
# (i, j, k) tiled matmul with f32 VMEM accumulator and pl.when init/finalize.
# ---------------------------------------------------------------------------
def _linear_tiled_kernel(x_ref, w_ref, b_ref, o_ref, acc_ref):
    k = pl.program_id(2)

    @pl.when(k == 0)
    def _init():
        acc_ref[...] = jnp.zeros_like(acc_ref)

    acc_ref[...] += jnp.dot(
        x_ref[...], w_ref[...], preferred_element_type=jnp.float32
    )

    @pl.when(k == pl.num_programs(2) - 1)
    def _finalize():
        o_ref[...] = (acc_ref[...] + b_ref[...].astype(jnp.float32)).astype(
            o_ref.dtype
        )


def _linear_pallas_tiled(x_p, w_pad, b_pad, B, d_out, *, tm, tn=128, tk=128):
    """Fallback 3-D tiled path; w_pad/b_pad already padded to 128 lanes."""
    M, K_pad = x_p.shape
    _, N_pad = w_pad.shape
    itemsize = jnp.dtype(x_p.dtype).itemsize
    grid = (M // tm, N_pad // tn, K_pad // tk)

    cost = pl.CostEstimate(
        flops=2 * M * K_pad * N_pad,
        transcendentals=0,
        bytes_accessed=itemsize
        * (M * K_pad * (N_pad // tn) + K_pad * N_pad * (M // tm) + N_pad + M * N_pad),
    )
    ws = itemsize * (
        2 * tm * tk + 2 * tk * tn + 2 * tn + 2 * tm * tn + tm * tn
    )
    vmem_limit = int(min(max(int(ws * 1.25), 16 * 1024 * 1024), 48 * 1024 * 1024))

    out_p = pl.pallas_call(
        _linear_tiled_kernel,
        out_shape=jax.ShapeDtypeStruct((M, N_pad), x_p.dtype),
        grid=grid,
        in_specs=[
            pl.BlockSpec((tm, tk), lambda i, j, k: (i, k)),
            pl.BlockSpec((tk, tn), lambda i, j, k: (k, j)),
            pl.BlockSpec((1, tn), lambda i, j, k: (0, j)),
        ],
        out_specs=pl.BlockSpec((tm, tn), lambda i, j, k: (i, j)),
        scratch_shapes=[pltpu.VMEM((tm, tn), jnp.float32)],
        compiler_params=pltpu.CompilerParams(
            dimension_semantics=("parallel", "parallel", "arbitrary"),
            vmem_limit_bytes=vmem_limit,
        ),
        cost_estimate=cost,
    )(x_p, w_pad, b_pad)
    return out_p[:B, :d_out]


def linear_pallas(x, w_pad, b_pad, d_out, *, tm_default=256):
    """y = x @ w_pad + b_pad, sliced back to (B, d_out).

    x:      (B, D_in)        unpadded activations
    w_pad:  (K_pad, N_pad)   weight, already transposed + padded (once, in init)
    b_pad:  (1, N_pad)       bias, already padded (once, in init)
    """
    B, D_in = x.shape
    K_pad, N_pad = w_pad.shape
    out_dtype = x.dtype
    itemsize = jnp.dtype(out_dtype).itemsize

    # --- pick the M tile -------------------------------------------------
    tm = min(tm_default, _round_up(B, 8))

    def working_set(tm_):
        # double-buffered x/out tiles, (at most) double-buffered resident w/b
        return itemsize * (
            2 * tm_ * K_pad + 2 * K_pad * N_pad + 2 * N_pad + 2 * tm_ * N_pad
        )

    vmem_budget = 40 * 1024 * 1024  # conservative for v7x (64 MiB core)
    weight_bytes = 2 * K_pad * N_pad * itemsize

    # Shrink tm (multiples of 8) if the working set is too big.
    while tm > 8 and working_set(tm) > vmem_budget:
        tm = max(8, _round_up(tm // 2, 8))

    # --- pad x so M is a multiple of tm and K is lane-padded -------------
    M = _round_up(B, tm)
    x_p = (
        x
        if (M == B and K_pad == D_in)
        else jnp.pad(x, ((0, M - B), (0, K_pad - D_in)))
    )

    # Weight cannot be kept resident -> fall back to the 3-D tiled path.
    if weight_bytes > 24 * 1024 * 1024:
        return _linear_pallas_tiled(x_p, w_pad, b_pad, B, d_out, tm=tm)

    grid = (M // tm,)

    cost = pl.CostEstimate(
        flops=2 * M * K_pad * N_pad,
        transcendentals=0,
        bytes_accessed=itemsize * (M * K_pad + K_pad * N_pad + N_pad + M * N_pad),
    )
    vmem_limit = int(
        min(max(int(working_set(tm) * 1.25), 16 * 1024 * 1024), 48 * 1024 * 1024)
    )

    out_p = pl.pallas_call(
        _linear_resident_kernel,
        out_shape=jax.ShapeDtypeStruct((M, N_pad), out_dtype),
        grid=grid,
        in_specs=[
            pl.BlockSpec((tm, K_pad), lambda i: (i, 0)),
            pl.BlockSpec((K_pad, N_pad), lambda i: (0, 0)),  # resident weight
            pl.BlockSpec((1, N_pad), lambda i: (0, 0)),      # resident bias
        ],
        out_specs=pl.BlockSpec((tm, N_pad), lambda i: (i, 0)),
        compiler_params=pltpu.CompilerParams(
            dimension_semantics=("parallel",),
            vmem_limit_bytes=vmem_limit,
        ),
        cost_estimate=cost,
    )(x_p, w_pad, b_pad)

    if M != B or N_pad != d_out:
        out_p = out_p[:B, :d_out]
    return out_p


def init_linear_params(key, input_dim, output_dim, dtype=jnp.float32):
    """Deterministic init mirroring torch.nn.Linear defaults
    (kaiming-uniform weight, uniform bias with bound 1/sqrt(fan_in))."""
    kw, kb = jax.random.split(key)
    bound_w = jnp.sqrt(1.0 / input_dim)  # kaiming_uniform(a=sqrt(5)) bound
    W = jax.random.uniform(
        kw, (output_dim, input_dim), dtype, minval=-bound_w, maxval=bound_w
    )
    bound_b = 1.0 / jnp.sqrt(input_dim)
    b = jax.random.uniform(
        kb, (output_dim,), dtype, minval=-bound_b, maxval=bound_b
    )
    return W, b


class BottomModelDecoderLayer1Pallas:
    """JAX/Pallas equivalent of BottomModelDecoder_layer1 (a single Linear)."""

    def __init__(self, input_dim, output_dim, key, dtype=jnp.float32):
        self.input_dim = input_dim
        self.output_dim = output_dim
        self.W, self.b = init_linear_params(key, input_dim, output_dim, dtype)

        # Transpose + pad the weight / bias ONCE (lane-padded to 128 only).
        k_pad = _round_up(input_dim, 128)
        n_pad = _round_up(output_dim, 128)
        w_t = jnp.asarray(self.W.T)  # (input_dim, output_dim)
        self.W_t_pad = jnp.pad(
            w_t, ((0, k_pad - input_dim), (0, n_pad - output_dim))
        )
        self.b_pad = jnp.pad(
            self.b.reshape(1, output_dim), ((0, 0), (0, n_pad - output_dim))
        )

    def __call__(self, x):
        return linear_pallas(x, self.W_t_pad, self.b_pad, self.output_dim)


if __name__ == "__main__":
    key = jax.random.PRNGKey(0)
    k_param, k_x, k_param2, k_x2 = jax.random.split(key, 4)

    # --- Small case matching the module's toy usage ---------------------
    batch, input_dim, output_dim = 8, 32, 16
    model = BottomModelDecoderLayer1Pallas(input_dim, output_dim, k_param)
    x = jax.random.normal(k_x, (batch, input_dim), dtype=jnp.float32)

    out = jax.block_until_ready(model(x))
    ref = x @ model.W.T + model.b
    assert out.shape == (batch, output_dim)
    assert jnp.allclose(out, ref, atol=1e-4, rtol=1e-4), "small-case mismatch"

    # --- Larger case: exercises 2 parallel M tiles + resident weight -----
    B2, D_in2, D_out2 = 512, 1024, 384
    model2 = BottomModelDecoderLayer1Pallas(D_in2, D_out2, k_param2)
    x2 = jax.random.normal(k_x2, (B2, D_in2), dtype=jnp.float32)

    out2 = jax.block_until_ready(model2(x2))
    ref2 = (
        jnp.dot(x2, model2.W.T, precision=jax.lax.Precision.HIGHEST) + model2.b
    )
    assert out2.shape == (B2, D_out2)
    assert jnp.allclose(out2, ref2, atol=1e-2, rtol=1e-2), "tiled-case mismatch"

    print("KERNEL_OK")
</pallas_src>

<mosaic_0001>
module attributes {stable_mosaic.version = 11 : i64} {
  func.func @_linear_resident_kernel(%arg0: i32, %arg1: memref<8x128xf32, #tpu.memory_space<vmem>>, %arg2: memref<128x128xf32, #tpu.memory_space<vmem>>, %arg3: memref<1x128xf32, #tpu.memory_space<vmem>>, %arg4: memref<8x128xf32, #tpu.memory_space<vmem>>) attributes {dimension_semantics = [#tpu.dimension_semantics<parallel>], iteration_bounds = array<i64: 1>, scalar_prefetch = 0 : i64, scratch_operands = 0 : i64, tpu.core_type = #tpu.core_type<tc>, window_params = [{transform_indices = @transform_0, window_bounds = array<i64: 8, 128>}, {pipeline_mode = #tpu.pipeline_mode<synchronous>, transform_indices = @transform_1, window_bounds = array<i64: 128, 128>}, {pipeline_mode = #tpu.pipeline_mode<synchronous>, transform_indices = @transform_2, window_bounds = array<i64: 1, 128>}, {transform_indices = @transform_3, window_bounds = array<i64: 8, 128>}]} {
    %c0 = arith.constant 0 : index
    %c0_0 = arith.constant 0 : index
    %0 = vector.load %arg1[%c0, %c0_0] : memref<8x128xf32, #tpu.memory_space<vmem>>, vector<8x128xf32>
    %c0_1 = arith.constant 0 : index
    %c0_2 = arith.constant 0 : index
    %1 = vector.load %arg2[%c0_1, %c0_2] : memref<128x128xf32, #tpu.memory_space<vmem>>, vector<128x128xf32>
    %cst = arith.constant dense<0.000000e+00> : vector<8x128xf32>
    %2 = tpu.matmul %0, %1, %cst {dimension_numbers = #tpu.dot_dimension_numbers<[1], [0], [0], [1], [0, 0, 1, 1], [], []>} : vector<8x128xf32>, vector<128x128xf32>, vector<8x128xf32> -> vector<8x128xf32>
    %c0_3 = arith.constant 0 : index
    %c0_4 = arith.constant 0 : index
    %3 = vector.load %arg3[%c0_3, %c0_4] : memref<1x128xf32, #tpu.memory_space<vmem>>, vector<1x128xf32>
    %4 = vector.broadcast %3 : vector<1x128xf32> to vector<8x128xf32>
    %5 = arith.addf %2, %4 : vector<8x128xf32>
    %c0_5 = arith.constant 0 : index
    %c0_6 = arith.constant 0 : index
    %6 = vector.load %arg4[%c0_5, %c0_6] : memref<8x128xf32, #tpu.memory_space<vmem>>, vector<8x128xf32>
    tpu.vector_store %arg4[%c0_5, %c0_6], %5 {strides = array<i32>} : memref<8x128xf32, #tpu.memory_space<vmem>>, vector<8x128xf32>,
    return
  }
  func.func @transform_0(%arg0: i32) -> (i32, i32) {
    %c0_i32 = arith.constant 0 : i32
    %c0_i32_0 = arith.constant 0 : i32
    return %arg0, %c0_i32 : i32, i32
  }
  func.func @transform_1(%arg0: i32) -> (i32, i32) {
    %c0_i32 = arith.constant 0 : i32
    %c0_i32_0 = arith.constant 0 : i32
    %c0_i32_1 = arith.constant 0 : i32
    return %c0_i32, %c0_i32_0 : i32, i32
  }
  func.func @transform_2(%arg0: i32) -> (i32, i32) {
    %c0_i32 = arith.constant 0 : i32
    %c0_i32_0 = arith.constant 0 : i32
    %c0_i32_1 = arith.constant 0 : i32
    return %c0_i32, %c0_i32_0 : i32, i32
  }
  func.func @transform_3(%arg0: i32) -> (i32, i32) {
    %c0_i32 = arith.constant 0 : i32
    %c0_i32_0 = arith.constant 0 : i32
    return %arg0, %c0_i32 : i32, i32
  }
}

</mosaic_0001>

<llo_original>
// kernel: tpu_custom_call.1
$region0: #{tpu_custom_call.1}
  #allocation0 [shape = 'u32[]', space=smem, size = 0x4, offset = 0x4, fixed_abs, tag = 'smem constant byte address 0x4 - core index']
  #allocation1 [shape = 'u32[72,128]{1,0:T(1,128)}', space=vmem, size = 0x9000, scoped, tag = 'internal scratch']
  %s0 = inlined_call_operand.hbm [shape: f32[8,128], index: 0, kind: input, shape index: {}]
  %s1 = inlined_call_operand.hbm [shape: f32[128,128], index: 1, kind: input, shape index: {}]
  %s2 = inlined_call_operand.vmem [shape: f32[1,128], index: 2, kind: input, shape index: {}]
  %s3 = inlined_call_operand.hbm [shape: f32[8,128], index: 3, kind: output, shape index: {}]
  %s4 = sld [smem:[#allocation0]]
  $region30: #{tpu_custom_call.1} parent=0
    _
  %s6 = ssub.s32 1, %s4
  %s7 = scalar_select 0, %s6, %s4
  $region1: #{tpu_custom_call.1} parent=0
    #allocation2 [shape = 'u8[4096]{0}', space=vmem, size = 0x1000, scoped, tag = 'input window, operand 0, single buffered']
    #allocation3 [shape = 's32[1]{0}', space=sflag, size = 0x4, scoped, tag = 'scoped memory for tpu_custom_call.1']
    #allocation4 [shape = 's32[1]{0}', space=sflag, size = 0x4, scoped, tag = 'scoped memory for tpu_custom_call.1']
    #allocation5 [shape = 'u8[65536]{0}', space=vmem, size = 0x10000, scoped, tag = 'input window, operand 1, single buffered']
    #allocation6 [shape = 's32[1]{0}', space=sflag, size = 0x4, scoped, tag = 'scoped memory for tpu_custom_call.1']
    #allocation7 [shape = 'u8[4096]{0}', space=vmem, size = 0x1000, scoped, tag = 'output window, operand 0, single buffered']
    %8 = vsyncpa [#allocation3], 0
    %9 = vsyncpa [#allocation6], 0
    %10 = vsyncpa [#allocation4], 0
    // Predicated region
    $region2: #{tpu_custom_call.1} parent=1 // pred_check
      _
    $region3: #{tpu_custom_call.1} parent=1 // pred_check_branch
      %12 = sbr.rel (0) target = $region5
    $region4: #{tpu_custom_call.1} parent=1 // pred_region
      %14 = vsyncadd [#allocation3], 0
      %s16 = sshll.u32 %s0, 4
      %s17 = int_to_ptr.hbm [resolvable:$true] %s16
      %s18 = sshll.u32 [#allocation2], 4
      %s19 = int_to_ptr.vmem [resolvable:$true] %s18
      %21 = dma.hbm_to_vmem [thread:$0]  %s17, 128, %s19, [#allocation3]
    $region5: #{tpu_custom_call.1} parent=1 // pred_fallthru
      _
    // Predicated region
    $region6: #{tpu_custom_call.1} parent=1 // pred_check
      _
    $region7: #{tpu_custom_call.1} parent=1 // pred_check_branch
      %23 = sbr.rel (0) target = $region9
    $region8: #{tpu_custom_call.1} parent=1 // pred_region
      %25 = vsyncadd [#allocation6], 0
      %s26 = sshll.u32 %s1, 4
      %s27 = int_to_ptr.hbm [resolvable:$true] %s26
      %s28 = sshll.u32 [#allocation5], 4
      %s29 = int_to_ptr.vmem [resolvable:$true] %s28
      %34 = dma.hbm_to_vmem [thread:$0]  %s27, 2048, %s29, [#allocation6], 128, 128, 8
    $region9: #{tpu_custom_call.1} parent=1 // pred_fallthru
      _
    // Predicated region
    $region10: #{tpu_custom_call.1} parent=1 // pred_check
      _
    $region11: #{tpu_custom_call.1} parent=1 // pred_check_branch
      %36 = sbr.rel (0) target = $region13
    $region12: #{tpu_custom_call.1} parent=1 // pred_region
      _
    $region13: #{tpu_custom_call.1} parent=1 // pred_fallthru
      _
    // Predicated region
    $region14: #{tpu_custom_call.1} parent=1 // pred_check
      _
    $region15: #{tpu_custom_call.1} parent=1 // pred_check_branch
      %38 = sbr.rel (0) target = $region17
    $region16: #{tpu_custom_call.1} parent=1 // pred_region
      %40 = dma.done [#allocation3], 128
    $region17: #{tpu_custom_call.1} parent=1 // pred_fallthru
      _
    // Predicated region
    $region18: #{tpu_custom_call.1} parent=1 // pred_check
      _
    $region19: #{tpu_custom_call.1} parent=1 // pred_check_branch
      %42 = sbr.rel (0) target = $region21
    $region20: #{tpu_custom_call.1} parent=1 // pred_region
      %44 = dma.done [#allocation6], 2048
    $region21: #{tpu_custom_call.1} parent=1 // pred_fallthru
      _
    %v45 = vld [vmem:[#allocation2] sm:$0xff]
    %v46 = vld [vmem:[#allocation5] sm:$0xff]
    %v47 = vld [vmem:[#allocation5 + $0x8] sm:$0xff]
    %v48 = vld [vmem:[#allocation5 + $0x10] sm:$0xff]
    %v49 = vld [vmem:[#allocation5 + $0x18] sm:$0xff]
    %v50 = vld [vmem:[#allocation5 + $0x20] sm:$0xff]
    %v51 = vld [vmem:[#allocation5 + $0x28] sm:$0xff]
    %v52 = vld [vmem:[#allocation5 + $0x30] sm:$0xff]
    %v53 = vld [vmem:[#allocation5 + $0x38] sm:$0xff]
    %v54 = vld [vmem:[#allocation5 + $0x40] sm:$0xff]
    %v55 = vld [vmem:[#allocation5 + $0x48] sm:$0xff]
    %v56 = vld [vmem:[#allocation5 + $0x50] sm:$0xff]
    %v57 = vld [vmem:[#allocation5 + $0x58] sm:$0xff]
    %v58 = vld [vmem:[#allocation5 + $0x60] sm:$0xff]
    %v59 = vld [vmem:[#allocation5 + $0x68] sm:$0xff]
    %v60 = vld [vmem:[#allocation5 + $0x70] sm:$0xff]
    %v61 = vld [vmem:[#allocation5 + $0x78] sm:$0xff]
    %v62 = vld [vmem:[%s2] sm:$0x1]
    %v64 = vperm.slane %v62, 0
    %66 = vmatpush.msra.mxu0 %v61
    %67 = vmatpush.msra.mxu0 %v60
    %68 = vmatpush.msra.mxu0 %v59
    %69 = vmatpush.msra.mxu0 %v58
    %70 = vmatpush.msra.mxu0 %v57
    %71 = vmatpush.msra.mxu0 %v56
    %72 = vmatpush.msra.mxu0 %v55
    %73 = vmatpush.msra.mxu0 %v54
    %74 = vmatpush.msra.mxu0 %v53
    %75 = vmatpush.msra.mxu0 %v52
    %76 = vmatpush.msra.mxu0 %v51
    %77 = vmatpush.msra.mxu0 %v50
    %78 = vmatpush.msra.mxu0 %v49
    %79 = vmatpush.msra.mxu0 %v48
    %80 = vmatpush.msra.mxu0 %v47
    %81 = vmatpush.msra.mxu0 %v46
    %82 = vmatmul.f32.gmra.mxu0 %v45
    %v83 = vpop.f32.mrf.mxu0
    %v84 = vadd.f32 %v64, %v83
    %85 = vdwg.mxu0
    %86 = vst [vmem:[#allocation7] sm:$0xff] %v84
    // Predicated region
    $region22: #{tpu_custom_call.1} parent=1 // pred_check
      _
    $region23: #{tpu_custom_call.1} parent=1 // pred_check_branch
      %88 = sbr.rel (0) target = $region25
    $region24: #{tpu_custom_call.1} parent=1 // pred_region
      %90 = vsyncadd [#allocation4], 0
      %s92 = sshll.u32 [#allocation7], 4
      %s93 = int_to_ptr.vmem [resolvable:$true] %s92
      %s94 = sshll.u32 %s3, 4
      %s95 = int_to_ptr.hbm [resolvable:$true] %s94
      %97 = dma.vmem_to_hbm [thread:$0]  %s93, 128, %s95, [#allocation4]
    $region25: #{tpu_custom_call.1} parent=1 // pred_fallthru
      _
    // Predicated region
    $region26: #{tpu_custom_call.1} parent=1 // pred_check
      _
    $region27: #{tpu_custom_call.1} parent=1 // pred_check_branch
      %99 = sbr.rel (0) target = $region29
    $region28: #{tpu_custom_call.1} parent=1 // pred_region
      %101 = dma.done [#allocation4], 128
    $region29: #{tpu_custom_call.1} parent=1 // pred_fallthru
      _
    %102 = vsyncpa [#allocation3], 1
    %103 = vsyncpa [#allocation6], 1
    %104 = vsyncpa [#allocation4], 1

</llo_original>
